<compile_context>
chip_gen: v6e
topology: v6e:2x2x1
jax: 0.10.0
libtpu: 0.0.40
codegen_flags: <defaults>
</compile_context>

<pallas_src>
import jax
import jax.numpy as jnp
from jax.experimental import pallas as pl
from jax.experimental.pallas import tpu as pltpu

_LANES = 128


def _cox_nll_kernel(risk_ref, event_ref, out_ref):
    risk = risk_ref[...]      # (Rp, 128) f32, samples packed row-major
    event = event_ref[...]    # (Rp, 128) f32, padding positions have event == 0

    rp = risk.shape[0]

    # Numerical stability: log(cumsum(exp(r))) = m + log(cumsum(exp(r - m)))
    # and the shift m cancels exactly in (r - log_risk), so the loss value
    # is mathematically unchanged while exp can no longer overflow.
    m = jnp.max(risk)
    rs = risk - m
    hz = jnp.exp(rs)                                   # (Rp, 128)

    # Within-row inclusive prefix sum along the lane axis via a constant
    # 128x128 lower-triangular matmul (MXU).
    lrow = jax.lax.broadcasted_iota(jnp.int32, (_LANES, _LANES), 0)
    lcol = jax.lax.broadcasted_iota(jnp.int32, (_LANES, _LANES), 1)
    tri = (lrow <= lcol).astype(jnp.float32)           # (128, 128), 64 KiB
    cs_within = jnp.dot(hz, tri, preferred_element_type=jnp.float32)  # (Rp,128)

    # Cross-row carry: exclusive prefix of per-row totals.  Row totals are
    # the last column of cs_within; the exclusive prefix is a tiny (Rp,Rp)
    # strictly-lower-triangular matmul (Rp is at most a few dozen).
    srow = jax.lax.broadcasted_iota(jnp.int32, (rp, rp), 0)
    scol = jax.lax.broadcasted_iota(jnp.int32, (rp, rp), 1)
    stri = (scol < srow).astype(jnp.float32)           # (Rp, Rp)
    carry = jnp.dot(stri, cs_within, preferred_element_type=jnp.float32)
    carry = carry[:, _LANES - 1:_LANES]                # (Rp, 1): sum of rows < r

    cs = cs_within + carry                             # full inclusive cumsum

    log_risk = jnp.log(cs)
    censored = (rs - log_risk) * event                 # padding: event == 0

    num_observed = jnp.sum(event)
    out_ref[0, 0] = -jnp.sum(censored) / num_observed


def cox_nll_loss_pallas(risk_sorted, event_sorted):
    """risk_sorted, event_sorted: (N,) f32, already sorted by time descending."""
    n = risk_sorted.shape[0]
    r = pl.cdiv(n, _LANES)
    rp = max(8, pl.cdiv(r, 8) * 8)                     # pad rows to sublane multiple
    total = rp * _LANES
    pad = total - n

    # Dense row-major packing: sample i -> (row i // 128, lane i % 128).
    # Padding positions get risk = 0 (exp = 1) and event = 0, so they only
    # affect cumsum values at padding positions, which are masked by event.
    risk_p = jnp.pad(risk_sorted.astype(jnp.float32), (0, pad)).reshape(rp, _LANES)
    event_p = jnp.pad(event_sorted.astype(jnp.float32), (0, pad)).reshape(rp, _LANES)

    out = pl.pallas_call(
        _cox_nll_kernel,
        out_shape=jax.ShapeDtypeStruct((1, 1), jnp.float32),
        in_specs=[
            pl.BlockSpec(memory_space=pltpu.MemorySpace.VMEM),
            pl.BlockSpec(memory_space=pltpu.MemorySpace.VMEM),
        ],
        out_specs=pl.BlockSpec(memory_space=pltpu.MemorySpace.SMEM),
    )(risk_p, event_p)
    return out[0, 0]


def loss_forward(representation, modalities, pred_hazard, event, time):
    """JAX equivalent of Loss.forward (representation / modalities unused)."""
    risk = jnp.squeeze(pred_hazard["hazard"])          # (N,)
    idx = jnp.argsort(-time)                           # sort time descending
    # TODO(synk): argsort tie-breaking for exactly-equal times may differ
    # from torch.sort; loss can differ slightly only when times tie.
    event_s = event[idx].astype(jnp.float32)
    risk_s = risk[idx].astype(jnp.float32)
    return cox_nll_loss_pallas(risk_s, event_s)


def _reference_loss(pred_hazard, event, time):
    risk = jnp.squeeze(pred_hazard["hazard"])
    idx = jnp.argsort(-time)
    event_s = event[idx].astype(jnp.float32)
    risk_s = risk[idx].astype(jnp.float32)
    hz = jnp.exp(risk_s)
    log_risk = jnp.log(jnp.cumsum(hz))
    censored = (risk_s - log_risk) * event_s
    return -jnp.sum(censored) / jnp.sum(event_s)


if __name__ == "__main__":
    key = jax.random.PRNGKey(0)
    k_h, k_t, k_r, k_h2, k_t2, k_e2 = jax.random.split(key, 6)

    # --- small case matching the module's typical use (N = 8) ---
    N = 8
    hazard = jax.random.normal(k_h, (N, 1), dtype=jnp.float32)
    time = jax.random.uniform(k_t, (N,), dtype=jnp.float32, minval=0.1, maxval=10.0)
    event = jnp.array([1, 0, 1, 1, 0, 1, 0, 1], dtype=jnp.float32)

    # unused by the loss, present only to match the forward signature
    representation = jax.random.normal(k_r, (N, 32), dtype=jnp.float32)
    modalities = ["clinical", "mRNA"]

    pred_hazard = {"hazard": hazard}

    out = loss_forward(representation, modalities, pred_hazard, event, time)
    out = jax.block_until_ready(out)
    ref = _reference_loss(pred_hazard, event, time)
    assert jnp.allclose(out, ref, rtol=1e-5, atol=1e-5), (out, ref)

    # --- larger case crossing the 128-lane boundary (exercises the carry) ---
    N2 = 200
    hazard2 = jax.random.normal(k_h2, (N2, 1), dtype=jnp.float32)
    time2 = jax.random.uniform(k_t2, (N2,), dtype=jnp.float32, minval=0.1, maxval=10.0)
    event2 = (jax.random.uniform(k_e2, (N2,)) > 0.5).astype(jnp.float32)
    pred_hazard2 = {"hazard": hazard2}

    out2 = loss_forward(representation, modalities, pred_hazard2, event2, time2)
    out2 = jax.block_until_ready(out2)
    ref2 = _reference_loss(pred_hazard2, event2, time2)
    assert jnp.allclose(out2, ref2, rtol=1e-5, atol=1e-5), (out2, ref2)

    print("KERNEL_OK")
</pallas_src>

<mosaic_0001>
module attributes {stable_mosaic.version = 11 : i64} {
  func.func @_cox_nll_kernel(%arg0: memref<8x128xf32, #tpu.memory_space<vmem>>, %arg1: memref<8x128xf32, #tpu.memory_space<vmem>>, %arg2: memref<1x1xf32, #tpu.memory_space<smem>>) attributes {dimension_semantics = [], scalar_prefetch = 0 : i64, scratch_operands = 0 : i64, tpu.core_type = #tpu.core_type<tc>} {
    %c0 = arith.constant 0 : index
    %c0_0 = arith.constant 0 : index
    %0 = vector.load %arg0[%c0, %c0_0] : memref<8x128xf32, #tpu.memory_space<vmem>>, vector<8x128xf32>
    %c0_1 = arith.constant 0 : index
    %c0_2 = arith.constant 0 : index
    %1 = vector.load %arg1[%c0_1, %c0_2] : memref<8x128xf32, #tpu.memory_space<vmem>>, vector<8x128xf32>
    %2 = vector.shape_cast %0 : vector<8x128xf32> to vector<1x8x128xf32>
    %cst = arith.constant dense<0xFF800000> : vector<1xf32>
    %3 = vector.multi_reduction <maximumf>, %2, %cst [1, 2] : vector<1x8x128xf32> to vector<1xf32>
    %4 = vector.shape_cast %3 : vector<1xf32> to vector<1x1x1xf32>
    %5 = vector.extract %4[0, 0, 0] : f32 from vector<1x1x1xf32>
    %6 = vector.broadcast %5 : f32 to vector<8x128xf32>
    %7 = arith.subf %0, %6 : vector<8x128xf32>
    %8 = math.exp %7 : vector<8x128xf32>
    %9 = tpu.iota {dimensions = array<i32: 0>} : vector<128x128xi32>
    %10 = tpu.iota {dimensions = array<i32: 1>} : vector<128x128xi32>
    %11 = arith.cmpi sle, %9, %10 : vector<128x128xi32>
    %12 = arith.extui %11 : vector<128x128xi1> to vector<128x128xi32>
    %13 = arith.sitofp %12 : vector<128x128xi32> to vector<128x128xf32>
    %cst_3 = arith.constant dense<0.000000e+00> : vector<8x128xf32>
    %14 = tpu.matmul %8, %13, %cst_3 {dimension_numbers = #tpu.dot_dimension_numbers<[1], [0], [0], [1], [0, 0, 1, 1], [], []>} : vector<8x128xf32>, vector<128x128xf32>, vector<8x128xf32> -> vector<8x128xf32>
    %15 = tpu.iota {dimensions = array<i32: 0>} : vector<8x8xi32>
    %16 = tpu.iota {dimensions = array<i32: 1>} : vector<8x8xi32>
    %17 = arith.cmpi slt, %16, %15 : vector<8x8xi32>
    %18 = arith.extui %17 : vector<8x8xi1> to vector<8x8xi32>
    %19 = arith.sitofp %18 : vector<8x8xi32> to vector<8x8xf32>
    %cst_4 = arith.constant dense<0.000000e+00> : vector<8x128xf32>
    %20 = tpu.matmul %19, %14, %cst_4 {dimension_numbers = #tpu.dot_dimension_numbers<[1], [0], [0], [1], [0, 0, 1, 1], [], []>} : vector<8x8xf32>, vector<8x128xf32>, vector<8x128xf32> -> vector<8x128xf32>
    %21 = vector.extract_strided_slice %20 {offsets = [0, 127], sizes = [8, 1], strides = [1, 1]} : vector<8x128xf32> to vector<8x1xf32>
    %22 = vector.broadcast %21 : vector<8x1xf32> to vector<8x128xf32>
    %23 = arith.addf %14, %22 : vector<8x128xf32>
    %24 = math.log %23 : vector<8x128xf32>
    %25 = arith.subf %7, %24 : vector<8x128xf32>
    %26 = arith.mulf %25, %1 : vector<8x128xf32>
    %27 = vector.shape_cast %1 : vector<8x128xf32> to vector<1x8x128xf32>
    %cst_5 = arith.constant dense<0.000000e+00> : vector<1xf32>
    %28 = vector.multi_reduction <add>, %27, %cst_5 [1, 2] : vector<1x8x128xf32> to vector<1xf32>
    %29 = vector.shape_cast %28 : vector<1xf32> to vector<1x1x1xf32>
    %30 = vector.extract %29[0, 0, 0] : f32 from vector<1x1x1xf32>
    %31 = vector.shape_cast %26 : vector<8x128xf32> to vector<1x8x128xf32>
    %cst_6 = arith.constant dense<0.000000e+00> : vector<1xf32>
    %32 = vector.multi_reduction <add>, %31, %cst_6 [1, 2] : vector<1x8x128xf32> to vector<1xf32>
    %33 = vector.shape_cast %32 : vector<1xf32> to vector<1x1x1xf32>
    %34 = vector.extract %33[0, 0, 0] : f32 from vector<1x1x1xf32>
    %cst_7 = arith.constant 0.000000e+00 : f32
    %35 = arith.subf %cst_7, %34 : f32
    %36 = arith.divf %35, %30 : f32
    %c0_8 = arith.constant 0 : index
    %c0_9 = arith.constant 0 : index
    %37 = memref.load %arg2[%c0_8, %c0_9] : memref<1x1xf32, #tpu.memory_space<smem>>
    memref.store %36, %arg2[%c0_8, %c0_9] : memref<1x1xf32, #tpu.memory_space<smem>>
    return
  }
}

</mosaic_0001>

<llo_original>
// kernel: tpu_custom_call.1
$region0: #{tpu_custom_call.1}
  #allocation0 [shape = 'u32[]', space=smem, size = 0x4, offset = 0x4, fixed_abs, tag = 'smem constant byte address 0x4 - core index']
  #allocation1 [shape = 'u32[144,128]{1,0:T(1,128)}', space=vmem, size = 0x12000, scoped, tag = 'internal scratch']
  %s0 = inlined_call_operand.hbm [shape: f32[8,128], index: 0, kind: input, shape index: {}]
  %s1 = inlined_call_operand.hbm [shape: f32[8,128], index: 1, kind: input, shape index: {}]
  %s2 = inlined_call_operand.hbm [shape: f32[1,1], index: 2, kind: output, shape index: {}]
  %s3 = sld [smem:[#allocation0]]
  $region26: #{tpu_custom_call.1} parent=0
    _
  %s5 = ssub.s32 1, %s3
  %s6 = scalar_select 0, %s5, %s3
  $region1: #{tpu_custom_call.1} parent=0
    #allocation2 [shape = 'u8[4096]{0}', space=vmem, size = 0x1000, scoped, tag = 'input window, operand 0, single buffered']
    #allocation3 [shape = 's32[1]{0}', space=sflag, size = 0x4, scoped, tag = 'scoped memory for tpu_custom_call.1']
    #allocation4 [shape = 's32[1]{0}', space=sflag, size = 0x4, scoped, tag = 'scoped memory for tpu_custom_call.1']
    #allocation5 [shape = 'u8[4096]{0}', space=vmem, size = 0x1000, scoped, tag = 'input window, operand 1, single buffered']
    #allocation6 [shape = 's32[1]{0}', space=sflag, size = 0x4, scoped, tag = 'scoped memory for tpu_custom_call.1']
    #allocation7 [shape = 'u8[512]{0}', space=smem, size = 0x200, scoped, tag = 'output window, operand 0, single buffered']
    %7 = vsyncpa [#allocation3], 0
    %8 = vsyncpa [#allocation6], 0
    %9 = vsyncpa [#allocation4], 0
    // Predicated region
    $region2: #{tpu_custom_call.1} parent=1 // pred_check
      _
    $region3: #{tpu_custom_call.1} parent=1 // pred_check_branch
      %11 = sbr.rel (0) target = $region5
    $region4: #{tpu_custom_call.1} parent=1 // pred_region
      %s13 = ssub.s32 128, 128
      %14 = vsyncadd [#allocation3], %s13
      %s16 = sshll.u32 [#allocation2], 4
      %s17 = int_to_ptr.vmem [resolvable:$true] %s16
      %19 = dma.hbm_to_vmem [thread:$0]  %s0, 128, %s17, [#allocation3]
    $region5: #{tpu_custom_call.1} parent=1 // pred_fallthru
      _
    // Predicated region
    $region6: #{tpu_custom_call.1} parent=1 // pred_check
      _
    $region7: #{tpu_custom_call.1} parent=1 // pred_check_branch
      %21 = sbr.rel (0) target = $region9
    $region8: #{tpu_custom_call.1} parent=1 // pred_region
      %s23 = ssub.s32 128, 128
      %24 = vsyncadd [#allocation6], %s23
      %s26 = sshll.u32 [#allocation5], 4
      %s27 = int_to_ptr.vmem [resolvable:$true] %s26
      %29 = dma.hbm_to_vmem [thread:$0]  %s1, 128, %s27, [#allocation6]
    $region9: #{tpu_custom_call.1} parent=1 // pred_fallthru
      _
    // Predicated region
    $region10: #{tpu_custom_call.1} parent=1 // pred_check
      _
    $region11: #{tpu_custom_call.1} parent=1 // pred_check_branch
      %31 = sbr.rel (0) target = $region13
    $region12: #{tpu_custom_call.1} parent=1 // pred_region
      %32 = dma.done [#allocation3], 128
    $region13: #{tpu_custom_call.1} parent=1 // pred_fallthru
      _
    // Predicated region
    $region14: #{tpu_custom_call.1} parent=1 // pred_check
      _
    $region15: #{tpu_custom_call.1} parent=1 // pred_check_branch
      %34 = sbr.rel (0) target = $region17
    $region16: #{tpu_custom_call.1} parent=1 // pred_region
      %35 = dma.done [#allocation6], 128
    $region17: #{tpu_custom_call.1} parent=1 // pred_fallthru
      _
    %v36 = vld [vmem:[#allocation2] sm:$0xff]
    %v37 = vld [vmem:[#allocation5] sm:$0xff]
    %38 = vmax.xlane.f32.xlu0 %v36
    %v39 = vpop.xlane.xlu0 %38
    %v40 = vrot.slane %v39, 4
    %v41 = vmax.f32 %v39, %v40
    %v42 = vrot.slane %v41, 2
    %v43 = vmax.f32 %v41, %v42
    %v44 = vrot.slane %v43, 1
    %v45 = vmax.f32 %v43, %v44
    %s46 = vtos %v45
    %v47 = vstv %s46
    %v48 = vsub.f32 %v36, %v47
    %v49 = vmul.f32 %v48, 1.442695
    %v50 = vpow.pop %v49
    %v51 = vlaneseq
    %v52 = vshrl.u32 %v51, 7
    %v53 = vadd.s32 %v52, 8
    %v54 = vadd.s32 %v52, 16
    %v55 = vadd.s32 %v52, 24
    %v56 = vadd.s32 %v52, 32
    %v57 = vadd.s32 %v52, 40
    %v58 = vadd.s32 %v52, 48
    %v59 = vadd.s32 %v52, 56
    %v60 = vadd.s32 %v52, 64
    %v61 = vadd.s32 %v52, 72
    %v62 = vadd.s32 %v52, 80
    %v63 = vadd.s32 %v52, 88
    %v64 = vadd.s32 %v52, 96
    %v65 = vadd.s32 %v52, 104
    %v66 = vadd.s32 %v52, 112
    %v67 = vadd.s32 %v52, 120
    %v68 = vlaneseq
    %v69 = vand.u32 %v68, 127
    %vm70 = vcmp.le.s32.totalorder %v52, %v69
    %vm71 = vcmp.le.s32.totalorder %v53, %v69
    %vm72 = vcmp.le.s32.totalorder %v54, %v69
    %vm73 = vcmp.le.s32.totalorder %v55, %v69
    %vm74 = vcmp.le.s32.totalorder %v56, %v69
    %vm75 = vcmp.le.s32.totalorder %v57, %v69
    %vm76 = vcmp.le.s32.totalorder %v58, %v69
    %vm77 = vcmp.le.s32.totalorder %v59, %v69
    %vm78 = vcmp.le.s32.totalorder %v60, %v69
    %vm79 = vcmp.le.s32.totalorder %v61, %v69
    %vm80 = vcmp.le.s32.totalorder %v62, %v69
    %vm81 = vcmp.le.s32.totalorder %v63, %v69
    %vm82 = vcmp.le.s32.totalorder %v64, %v69
    %vm83 = vcmp.le.s32.totalorder %v65, %v69
    %vm84 = vcmp.le.s32.totalorder %v66, %v69
    %vm85 = vcmp.le.s32.totalorder %v67, %v69
    %v86 = vsel %vm70, 1, 0
    %v87 = vsel %vm71, 1, 0
    %v88 = vsel %vm72, 1, 0
    %v89 = vsel %vm73, 1, 0
    %v90 = vsel %vm74, 1, 0
    %v91 = vsel %vm75, 1, 0
    %v92 = vsel %vm76, 1, 0
    %v93 = vsel %vm77, 1, 0
    %v94 = vsel %vm78, 1, 0
    %v95 = vsel %vm79, 1, 0
    %v96 = vsel %vm80, 1, 0
    %v97 = vsel %vm81, 1, 0
    %v98 = vsel %vm82, 1, 0
    %v99 = vsel %vm83, 1, 0
    %v100 = vsel %vm84, 1, 0
    %v101 = vsel %vm85, 1, 0
    %v102 = vcvt.s32.f32 %v86
    %v103 = vcvt.s32.f32 %v87
    %v104 = vcvt.s32.f32 %v88
    %v105 = vcvt.s32.f32 %v89
    %v106 = vcvt.s32.f32 %v90
    %v107 = vcvt.s32.f32 %v91
    %v108 = vcvt.s32.f32 %v92
    %v109 = vcvt.s32.f32 %v93
    %v110 = vcvt.s32.f32 %v94
    %v111 = vcvt.s32.f32 %v95
    %v112 = vcvt.s32.f32 %v96
    %v113 = vcvt.s32.f32 %v97
    %v114 = vcvt.s32.f32 %v98
    %v115 = vcvt.s32.f32 %v99
    %v116 = vcvt.s32.f32 %v100
    %v117 = vcvt.s32.f32 %v101
    %118 = vmatprep.subr.mxu0 0.0
    %119 = vmatpush1.msra.mxu0 %v117
    %120 = vmatprep.subr.mxu0 0.0
    %121 = vmatpush1.msra.mxu0 %v116
    %122 = vmatprep.subr.mxu0 0.0
    %123 = vmatpush1.msra.mxu0 %v115
    %124 = vmatprep.subr.mxu0 0.0
    %125 = vmatpush1.msra.mxu0 %v114
    %126 = vmatprep.subr.mxu0 0.0
    %127 = vmatpush1.msra.mxu0 %v113
    %128 = vmatprep.subr.mxu0 0.0
    %129 = vmatpush1.msra.mxu0 %v112
    %130 = vmatprep.subr.mxu0 0.0
    %131 = vmatpush1.msra.mxu0 %v111
    %132 = vmatprep.subr.mxu0 0.0
    %133 = vmatpush1.msra.mxu0 %v110
    %134 = vmatprep.subr.mxu0 0.0
    %135 = vmatpush1.msra.mxu0 %v109
    %136 = vmatprep.subr.mxu0 0.0
    %137 = vmatpush1.msra.mxu0 %v108
    %138 = vmatprep.subr.mxu0 0.0
    %139 = vmatpush1.msra.mxu0 %v107
    %140 = vmatprep.subr.mxu0 0.0
    %141 = vmatpush1.msra.mxu0 %v106
    %142 = vmatprep.subr.mxu0 0.0
    %143 = vmatpush1.msra.mxu0 %v105
    %144 = vmatprep.subr.mxu0 0.0
    %145 = vmatpush1.msra.mxu0 %v104
    %146 = vmatprep.subr.mxu0 0.0
    %147 = vmatpush1.msra.mxu0 %v103
    %148 = vmatprep.subr.mxu0 0.0
    %149 = vmatpush1.msra.mxu0 %v102
    %150 = vmatprep.subr.mxu0 0.0
    %151 = vmatpush2.msra.mxu0 0.0
    %152 = vmatprep.subr.mxu0 0.0
    %153 = vmatpush2.msra.mxu0 0.0
    %154 = vmatprep.subr.mxu0 0.0
    %155 = vmatpush2.msra.mxu0 0.0
    %156 = vmatprep.subr.mxu0 0.0
    %157 = vmatpush2.msra.mxu0 0.0
    %158 = vmatprep.subr.mxu0 0.0
    %159 = vmatpush2.msra.mxu0 0.0
    %160 = vmatprep.subr.mxu0 0.0
    %161 = vmatpush2.msra.mxu0 0.0
    %162 = vmatprep.subr.mxu0 0.0
    %163 = vmatpush2.msra.mxu0 0.0
    %164 = vmatprep.subr.mxu0 0.0
    %165 = vmatpush2.msra.mxu0 0.0
    %166 = vmatprep.subr.mxu0 0.0
    %167 = vmatpush2.msra.mxu0 0.0
    %168 = vmatprep.subr.mxu0 0.0
    %169 = vmatpush2.msra.mxu0 0.0
    %170 = vmatprep.subr.mxu0 0.0
    %171 = vmatpush2.msra.mxu0 0.0
    %172 = vmatprep.subr.mxu0 0.0
    %173 = vmatpush2.msra.mxu0 0.0
    %174 = vmatprep.subr.mxu0 0.0
    %175 = vmatpush2.msra.mxu0 0.0
    %176 = vmatprep.subr.mxu0 0.0
    %177 = vmatpush2.msra.mxu0 0.0
    %178 = vmatprep.subr.mxu0 0.0
    %179 = vmatpush2.msra.mxu0 0.0
    %180 = vmatprep.subr.mxu0 0.0
    %181 = vmatpush2.msra.mxu0 0.0
    %182 = vmatprep.mubr.f32.mxu0 0.0
    %183 = vmatmul.mubr.f32.gmra.mxu0 %v50
    %v184 = vpop.f32.mrf.mxu0
    %v185 = vadd.f32 0.0, %v184
    %v186 = vpop.f32.mrf.mxu0
    %187 = vdwg.mxu0
    %vm188 = vcmp.lt.s32.totalorder %v69, %v52
    %v189 = vsel %vm188, 1, 0
    %v190 = vcvt.s32.f32 %v189
    %vm191 = vcmask 64512
    %v193 = vsel %vm191, %v190, 0
    %195 = vmatprep.subr.mxu0 0.0
    %196 = vmatpush1.msra.mxu0 0.0
    %197 = vmatprep.subr.mxu0 0.0
    %198 = vmatpush1.msra.mxu0 0.0
    %199 = vmatprep.subr.mxu0 0.0
    %200 = vmatpush1.msra.mxu0 0.0
    %201 = vmatprep.subr.mxu0 0.0
    %202 = vmatpush1.msra.mxu0 0.0
    %203 = vmatprep.subr.mxu0 0.0
    %204 = vmatpush1.msra.mxu0 0.0
    %205 = vmatprep.subr.mxu0 0.0
    %206 = vmatpush1.msra.mxu0 0.0
    %207 = vmatprep.subr.mxu0 0.0
    %208 = vmatpush1.msra.mxu0 0.0
    %209 = vmatprep.subr.mxu0 0.0
    %210 = vmatpush1.msra.mxu0 0.0
    %211 = vmatprep.subr.mxu0 0.0
    %212 = vmatpush1.msra.mxu0 0.0
    %213 = vmatprep.subr.mxu0 0.0
    %214 = vmatpush1.msra.mxu0 0.0
    %215 = vmatprep.subr.mxu0 0.0
    %216 = vmatpush1.msra.mxu0 0.0
    %217 = vmatprep.subr.mxu0 0.0
    %218 = vmatpush1.msra.mxu0 0.0
    %219 = vmatprep.subr.mxu0 0.0
    %220 = vmatpush1.msra.mxu0 0.0
    %221 = vmatprep.subr.mxu0 0.0
    %222 = vmatpush1.msra.mxu0 0.0
    %223 = vmatprep.subr.mxu0 0.0
    %224 = vmatpush1.msra.mxu0 0.0
    %225 = vmatprep.subr.mxu0 0.0
    %226 = vmatpush1.msra.mxu0 %v185
    %227 = vmatprep.subr.mxu0 0.0
    %228 = vmatpush2.msra.mxu0 0.0
    %229 = vmatprep.subr.mxu0 0.0
    %230 = vmatpush2.msra.mxu0 0.0
    %231 = vmatprep.subr.mxu0 0.0
    %232 = vmatpush2.msra.mxu0 0.0
    %233 = vmatprep.subr.mxu0 0.0
    %234 = vmatpush2.msra.mxu0 0.0
    %235 = vmatprep.subr.mxu0 0.0
    %236 = vmatpush2.msra.mxu0 0.0
    %237 = vmatprep.subr.mxu0 0.0
    %238 = vmatpush2.msra.mxu0 0.0
    %239 = vmatprep.subr.mxu0 0.0
    %240 = vmatpush2.msra.mxu0 0.0
    %241 = vmatprep.subr.mxu0 0.0
    %242 = vmatpush2.msra.mxu0 0.0
    %243 = vmatprep.subr.mxu0 0.0
    %244 = vmatpush2.msra.mxu0 0.0
    %245 = vmatprep.subr.mxu0 0.0
    %246 = vmatpush2.msra.mxu0 0.0
    %247 = vmatprep.subr.mxu0 0.0
    %248 = vmatpush2.msra.mxu0 0.0
    %249 = vmatprep.subr.mxu0 0.0
    %250 = vmatpush2.msra.mxu0 0.0
    %251 = vmatprep.subr.mxu0 0.0
    %252 = vmatpush2.msra.mxu0 0.0
    %253 = vmatprep.subr.mxu0 0.0
    %254 = vmatpush2.msra.mxu0 0.0
    %255 = vmatprep.subr.mxu0 0.0
    %256 = vmatpush2.msra.mxu0 0.0
    %257 = vmatprep.subr.mxu0 0.0
    %258 = vmatpush2.msra.mxu0 0.0
    %259 = vmatprep.mubr.f32.mxu0 0.0
    %260 = vmatmul.mubr.f32.gmra.mxu0 %v193
    %v261 = vpop.f32.mrf.mxu0
    %v262 = vadd.f32 0.0, %v261
    %v263 = vpop.f32.mrf.mxu0
    %264 = vdwg.mxu0
    %266 = vset.pattern.permute.xlu0 127
    %267 = vperm.xlu0 %266, %v262
    %v268 = vpop.permute.xlu0 %267
    %v270 = vadd.f32 %v185, %v268
    %v271 = vlog2.pop %v270
    %v272 = vmul.f32 %v271, 0.6931472
    %v273 = vsub.f32 %v48, %v272
    %v274 = vmul.f32 %v273, %v37
    %275 = vadd.xlane.f32.xlu0 %v37
    %v276 = vpop.xlane.xlu0 %275
    %v277 = vrot.slane %v276, 4
    %v278 = vadd.f32 %v276, %v277
    %v279 = vrot.slane %v278, 2
    %v280 = vadd.f32 %v278, %v279
    %v281 = vrot.slane %v280, 1
    %v282 = vadd.f32 %v280, %v281
    %s283 = vtos %v282
    %284 = vadd.xlane.f32.xlu0 %v274
    %v285 = vpop.xlane.xlu0 %284
    %v286 = vrot.slane %v285, 4
    %v287 = vadd.f32 %v285, %v286
    %v288 = vrot.slane %v287, 2
    %v289 = vadd.f32 %v287, %v288
    %v290 = vrot.slane %v289, 1
    %v291 = vadd.f32 %v289, %v290
    %s292 = vtos %v291
    %s293 = ssub.f32 0.0, %s292
    %v294 = vstv %s283
    %v295 = vrcp.pop %v294
    %s296 = vtos %v295
    %s297 = smul.f32 %s293, %s296
    %s298 = scalar_lea.smem [#allocation7], 0
    %299 = sst [smem:[%s298]] %s297
    // Predicated region
    $region18: #{tpu_custom_call.1} parent=1 // pred_check
      _
    $region19: #{tpu_custom_call.1} parent=1 // pred_check_branch
      %301 = sbr.rel (0) target = $region21
    $region20: #{tpu_custom_call.1} parent=1 // pred_region
      %s303 = ssub.s32 16, 16
      %304 = vsyncadd [#allocation4], %s303
      %307 = dma.smem_to_hbm [#allocation7], 16, %s2, [#allocation4]
    $region21: #{tpu_custom_call.1} parent=1 // pred_fallthru
      _
    // Predicated region
    $region22: #{tpu_custom_call.1} parent=1 // pred_check
      _
    $region23: #{tpu_custom_call.1} parent=1 // pred_check_branch
      %309 = sbr.rel (0) target = $region25
    $region24: #{tpu_custom_call.1} parent=1 // pred_region
      %310 = dma.done [#allocation4], 16
    $region25: #{tpu_custom_call.1} parent=1 // pred_fallthru
      _
    %311 = sfence
    %312 = vsyncpa [#allocation3], 1
    %313 = vsyncpa [#allocation6], 1
    %314 = vsyncpa [#allocation4], 1

</llo_original>
